<compile_context>
chip_gen: v7x
topology: tpu7x:2x2x1
jax: 0.10.0
libtpu: 0.0.40
codegen_flags: <defaults>
</compile_context>

<pallas_src>
import math

import jax
import jax.numpy as jnp
from jax.experimental import pallas as pl
from jax.experimental.pallas import tpu as pltpu


def _make_cosine_cutoff_kernel(cutoff, eps):
    cutoff = float(cutoff)
    eps = float(eps)
    scale = math.pi / cutoff  # trace-time constant; no runtime divide

    def kernel(d_ref, o_ref):
        d = d_ref[...]
        # 0.5 * (cos(d * pi / cutoff) + 1.0)
        c = 0.5 * jnp.cos(d * scale) + 0.5
        # mask-multiply (matches torch semantics, incl. NaN propagation)
        m = (d < cutoff).astype(d.dtype)
        o_ref[...] = (c * m + eps).astype(o_ref.dtype)

    return kernel


def _cosine_cutoff_jnp(distances, cutoff=5.0, eps=0.1):
    """Plain fused-XLA reference / tiny-input fast path."""
    c = 0.5 * (jnp.cos(distances * (math.pi / float(cutoff))) + 1.0)
    return c * (distances < cutoff).astype(distances.dtype) + eps


def _sublane(dtype):
    # packed sublane count: 8 for 4-byte, 16 for 2-byte, 32 for 1-byte dtypes
    return max(8, 32 // jnp.dtype(dtype).itemsize)


def _run_slab(slab, cutoff, eps, max_tile_m, target_block_bytes, n_valid):
    """Run the elementwise kernel over a 2-D (rows, L) slab."""
    R, L = slab.shape
    itemsize = slab.dtype.itemsize
    s = _sublane(slab.dtype)

    if R <= s:
        tm = R  # full-dim block (legal even when < sublane multiple)
    else:
        # >= ~4 grid blocks (megacore + pipelining), sublane aligned, capped by
        # a ~4 MiB block-byte target and max_tile_m.
        tm = min(max_tile_m, ((pl.cdiv(R, 4) + s - 1) // s) * s)
        tm_bytes_cap = max(s, (target_block_bytes // max(1, L * itemsize)) // s * s)
        tm = max(s, min(tm, tm_bytes_cap))
        tm = min(tm, ((R + s - 1) // s) * s)

    grid = (pl.cdiv(R, tm),)  # ragged last block is masked by Pallas

    tile_bytes = tm * L * itemsize
    vmem_bytes = min(4 * tile_bytes + (2 << 20), 24 << 20)

    cost = pl.CostEstimate(
        flops=6 * n_valid,
        transcendentals=n_valid,
        bytes_accessed=2 * n_valid * itemsize,
    )

    kernel = _make_cosine_cutoff_kernel(cutoff, eps)
    return pl.pallas_call(
        kernel,
        out_shape=jax.ShapeDtypeStruct(slab.shape, slab.dtype),
        grid=grid,
        in_specs=[pl.BlockSpec((tm, L), lambda i: (i, 0))],
        out_specs=pl.BlockSpec((tm, L), lambda i: (i, 0)),
        compiler_params=pltpu.CompilerParams(
            dimension_semantics=("parallel",),
            vmem_limit_bytes=vmem_bytes,
        ),
        cost_estimate=cost,
    )(slab)


def cosine_cutoff(
    distances,
    cutoff=5.0,
    eps=0.1,
    *,
    lanes=512,
    max_tile_m=1024,
    target_block_bytes=4 << 20,
    min_pallas_elems=65536,
    use_pallas=None,
):
    """Elementwise cosine cutoff, any shape, computed in the input dtype."""
    orig_shape = distances.shape
    total = 1
    for d in orig_shape:
        total *= int(d)

    if total == 0:
        return _cosine_cutoff_jnp(distances, cutoff, eps)

    if use_pallas is None:
        use_pallas = total >= min_pallas_elems
    if not use_pallas:
        # Tiny inputs: fixed pallas_call overhead dominates; fused XLA wins.
        return _cosine_cutoff_jnp(distances, cutoff, eps)

    ndim = len(orig_shape)
    D = int(orig_shape[-1]) if ndim >= 1 else 1

    # Path A: direct 2-D tiling of the original array (zero extra HBM passes).
    if ndim >= 2 and (D % 128 == 0 or D >= 128):
        slab = distances.reshape(-1, D)  # leading-dim collapse: free
        out = _run_slab(slab, cutoff, eps, max_tile_m, target_block_bytes, total)
        return out.reshape(orig_shape)

    # Path B: flat lane-dense slab, no padding, when total divides by 128.
    flat = distances.reshape(-1)
    for cand in (lanes, 256, 128):
        if total % cand == 0:
            slab = flat.reshape(-1, cand)
            out = _run_slab(slab, cutoff, eps, max_tile_m, target_block_bytes, total)
            return out.reshape(orig_shape)

    # Path C: fully ragged fallback -- pad only to a multiple of 128 lanes.
    # (This is the only path that pays an extra pad/slice HBM pass.)
    L = 128
    padded = pl.cdiv(total, L) * L
    flat = jnp.pad(flat, (0, padded - total))
    slab = flat.reshape(-1, L)
    out = _run_slab(slab, cutoff, eps, max_tile_m, target_block_bytes, total)
    return out.reshape(-1)[:total].reshape(orig_shape)


if __name__ == "__main__":
    key = jax.random.PRNGKey(0)
    k1, k2, k3 = jax.random.split(key, 3)

    # Small shape consistent with the module: 16 "atoms" x 128 neighbor distances.
    d1 = jax.random.uniform(k1, (16, 128), dtype=jnp.float32, minval=0.0, maxval=8.0)
    out1 = jax.block_until_ready(cosine_cutoff(d1, 5.0, 0.1, use_pallas=True))
    ref1 = _cosine_cutoff_jnp(d1, 5.0, 0.1)
    assert out1.shape == d1.shape and out1.dtype == d1.dtype
    assert jnp.allclose(out1, ref1, atol=1e-5, rtol=1e-5), "mismatch (direct path)"

    # Trailing dim >= 128 but not a multiple of 128 -> copy-free full-dim path.
    d2 = jax.random.uniform(k2, (301, 160), dtype=jnp.float32, minval=0.0, maxval=8.0)
    out2 = jax.block_until_ready(cosine_cutoff(d2, 5.0, 0.1, use_pallas=True))
    assert jnp.allclose(out2, _cosine_cutoff_jnp(d2, 5.0, 0.1), atol=1e-5, rtol=1e-5), \
        "mismatch (full-dim lane path)"

    # Fully ragged shape -> padded fallback path (ragged last block masked).
    d3 = jax.random.uniform(k3, (301, 97), dtype=jnp.float32, minval=0.0, maxval=8.0)
    out3 = jax.block_until_ready(cosine_cutoff(d3, 5.0, 0.1, use_pallas=True))
    assert jnp.allclose(out3, _cosine_cutoff_jnp(d3, 5.0, 0.1), atol=1e-5, rtol=1e-5), \
        "mismatch (padded path)"

    # Tiny-input auto-bypass (plain fused XLA elementwise).
    out4 = jax.block_until_ready(cosine_cutoff(d1, 5.0, 0.1))
    assert jnp.allclose(out4, ref1, atol=1e-5, rtol=1e-5), "mismatch (bypass path)"

    print("KERNEL_OK")
</pallas_src>

<mosaic_0001>
module attributes {stable_mosaic.version = 11 : i64} {
  func.func @kernel(%arg0: i32, %arg1: memref<8x128xf32, #tpu.memory_space<vmem>>, %arg2: memref<8x128xf32, #tpu.memory_space<vmem>>) attributes {dimension_semantics = [#tpu.dimension_semantics<parallel>], iteration_bounds = array<i64: 2>, scalar_prefetch = 0 : i64, scratch_operands = 0 : i64, tpu.core_type = #tpu.core_type<tc>, window_params = [{transform_indices = @transform_0, window_bounds = array<i64: 8, 128>}, {transform_indices = @transform_1, window_bounds = array<i64: 8, 128>}]} {
    %c0 = arith.constant 0 : index
    %c0_0 = arith.constant 0 : index
    %0 = vector.load %arg1[%c0, %c0_0] : memref<8x128xf32, #tpu.memory_space<vmem>>, vector<8x128xf32>
    %cst = arith.constant 0.628318548 : f32
    %1 = vector.broadcast %cst : f32 to vector<8x128xf32>
    %2 = arith.mulf %0, %1 : vector<8x128xf32>
    %3 = math.cos %2 : vector<8x128xf32>
    %cst_1 = arith.constant 5.000000e-01 : f32
    %4 = vector.broadcast %cst_1 : f32 to vector<8x128xf32>
    %5 = arith.mulf %4, %3 : vector<8x128xf32>
    %cst_2 = arith.constant 5.000000e-01 : f32
    %6 = vector.broadcast %cst_2 : f32 to vector<8x128xf32>
    %7 = arith.addf %5, %6 : vector<8x128xf32>
    %cst_3 = arith.constant 5.000000e+00 : f32
    %8 = vector.broadcast %cst_3 : f32 to vector<8x128xf32>
    %9 = arith.cmpf olt, %0, %8 : vector<8x128xf32>
    %10 = arith.extui %9 : vector<8x128xi1> to vector<8x128xi32>
    %11 = arith.sitofp %10 : vector<8x128xi32> to vector<8x128xf32>
    %12 = arith.mulf %7, %11 : vector<8x128xf32>
    %cst_4 = arith.constant 1.000000e-01 : f32
    %13 = vector.broadcast %cst_4 : f32 to vector<8x128xf32>
    %14 = arith.addf %12, %13 : vector<8x128xf32>
    %c0_5 = arith.constant 0 : index
    %c0_6 = arith.constant 0 : index
    %15 = vector.load %arg2[%c0_5, %c0_6] : memref<8x128xf32, #tpu.memory_space<vmem>>, vector<8x128xf32>
    tpu.vector_store %arg2[%c0_5, %c0_6], %14 {strides = array<i32>} : memref<8x128xf32, #tpu.memory_space<vmem>>, vector<8x128xf32>,
    return
  }
  func.func @transform_0(%arg0: i32) -> (i32, i32) {
    %c0_i32 = arith.constant 0 : i32
    %c0_i32_0 = arith.constant 0 : i32
    return %arg0, %c0_i32 : i32, i32
  }
  func.func @transform_1(%arg0: i32) -> (i32, i32) {
    %c0_i32 = arith.constant 0 : i32
    %c0_i32_0 = arith.constant 0 : i32
    return %arg0, %c0_i32 : i32, i32
  }
}

</mosaic_0001>

<llo_original>
// kernel: tpu_custom_call.1
$region0: #{tpu_custom_call.1}
  #allocation0 [shape = 'u32[]', space=smem, size = 0x4, offset = 0x4, fixed_abs, tag = 'smem constant byte address 0x4 - core index']
  #allocation1 [shape = 'u32[144,128]{1,0:T(1,128)}', space=vmem, size = 0x12000, scoped, tag = 'internal scratch']
  %s0 = inlined_call_operand.hbm [shape: f32[16,128], index: 0, kind: input, shape index: {}]
  %s1 = inlined_call_operand.hbm [shape: f32[16,128], index: 1, kind: output, shape index: {}]
  %s2 = sld [smem:[#allocation0]]
  $region41: #{tpu_custom_call.1} parent=0
    _
  %s4 = ssub.s32 1, %s2
  %s5 = scalar_select 0, %s4, %s2
  $region1: #{tpu_custom_call.1} parent=0
    #allocation2 [shape = 'u8[8192]{0}', space=vmem, size = 0x2000, scoped, tag = 'input window, operand 0']
    #allocation3 [shape = 's32[2]{0}', space=sflag, size = 0x8, scoped, tag = 'scoped memory for tpu_custom_call.1']
    #allocation4 [shape = 's32[2]{0}', space=sflag, size = 0x8, scoped, tag = 'scoped memory for tpu_custom_call.1']
    #allocation5 [shape = 'u8[8192]{0}', space=vmem, size = 0x2000, scoped, tag = 'output window, operand 0']
    %6 = vsyncpa [#allocation3], 0
    %s7 = scalar_lea.sflag [#allocation3], 1
    %8 = vsyncpa %s7, 0
    %9 = vsyncpa [#allocation4], 0
    %s10 = scalar_lea.sflag [#allocation4], 1
    %11 = vsyncpa %s10, 0
    loop: start=0, step=1, limit=4
    $region2: #{tpu_custom_call.1} parent=1 // loop_pre_header
      _
    $region3: #{tpu_custom_call.1} parent=1 // loop_header
      %s13 = sphi 0, %s17
      %p14 = scmp.ge.s32.totalorder %s13, 4
      %s23 = sphi 0, %s25
      %s26 = sphi 0, %s23
      %s27 = sphi 0, %s26
      %s43 = sphi 0, %s27
      %s49 = sphi 0, %s51
      %s52 = sphi 0, %s49
      %s53 = sphi 0, %s52
      %s69 = sphi 0, %s53
    $region4: #{tpu_custom_call.1} parent=1 // loop_header_branch
      %16 = sbr.rel (%p14) target = $region8
    $region5: #{tpu_custom_call.1} parent=1 // loop_body
      %s18 = ssub.s32 %s13, 1
      %s19 = ssub.s32 %s13, 2
      %s20 = sadd.s32 %s13, 1
      %s21 = ssub.s32 %s13, %s20
      %p22 = scmp.eq.s32.totalorder %s21, 0
      %s24 = sadd.s32 %s23, 1
      %s25 = scalar_select %p22, %s23, %s24
      %p28 = pneg %p22
      %p29 = scmp.eq.s32.totalorder %s13, 1
      %p30 = por %p28, %p29
      %p31 = scmp.ne.s32.totalorder %s23, %s26
      %p32 = scmp.eq.s32.totalorder %s13, 0
      %p33 = por %p31, %p32
      %p34 = scmp.ne.s32.totalorder %s23, %s26
      %p35 = scmp.eq.s32.totalorder %s18, 1
      %p36 = por %p34, %p35
      %p37 = scmp.ne.s32.totalorder %s26, %s27
      %p38 = scmp.eq.s32.totalorder %s18, 0
      %p39 = por %p37, %p38
      %p40 = scmp.ne.s32.totalorder %s26, %s27
      %p41 = scmp.eq.s32.totalorder %s19, 1
      %p42 = por %p40, %p41
      %p44 = scmp.ne.s32.totalorder %s27, %s43
      %p45 = scmp.eq.s32.totalorder %s19, 0
      %p46 = por %p44, %p45
      %s47 = ssub.s32 %s13, %s20
      %p48 = scmp.eq.s32.totalorder %s47, 0
      %s50 = sadd.s32 %s49, 1
      %s51 = scalar_select %p48, %s49, %s50
      %p54 = pneg %p48
      %p55 = scmp.eq.s32.totalorder %s13, 1
      %p56 = por %p54, %p55
      %p57 = scmp.ne.s32.totalorder %s49, %s52
      %p58 = scmp.eq.s32.totalorder %s13, 0
      %p59 = por %p57, %p58
      %p60 = scmp.ne.s32.totalorder %s49, %s52
      %p61 = scmp.eq.s32.totalorder %s18, 1
      %p62 = por %p60, %p61
      %p63 = scmp.ne.s32.totalorder %s52, %s53
      %p64 = scmp.eq.s32.totalorder %s18, 0
      %p65 = por %p63, %p64
      %p66 = scmp.ne.s32.totalorder %s52, %s53
      %p67 = scmp.eq.s32.totalorder %s19, 1
      %p68 = por %p66, %p67
      %p70 = scmp.ne.s32.totalorder %s53, %s69
      %p71 = scmp.eq.s32.totalorder %s19, 0
      %p72 = por %p70, %p71
      %p73 = scmp.le.s32.totalorder 1, %s13
      %p74 = scmp.lt.s32.totalorder %s13, 3
      %p75 = pnand %p73, %p74
      %p76 = pneg %p75
      // Predicated region
      $region9: #{tpu_custom_call.1} parent=5 // pred_check
        _
      $region10: #{tpu_custom_call.1} parent=5 // pred_check_branch
        %78 = sbr.rel (%p75) target = $region12
      $region11: #{tpu_custom_call.1} parent=5 // pred_region
        %s79 = ssub.s32 %s13, 1
      $region12: #{tpu_custom_call.1} parent=5 // pred_fallthru
        _
      %p80 = scmp.lt.s32.totalorder %s13, 2
      // Predicated region
      $region13: #{tpu_custom_call.1} parent=5 // pred_check
        %p81 = pneg %p80
      $region14: #{tpu_custom_call.1} parent=5 // pred_check_branch
        %83 = sbr.rel (%p81) target = $region16
      $region15: #{tpu_custom_call.1} parent=5 // pred_region
        // Predicated region
        $region17: #{tpu_custom_call.1} parent=15 // pred_check
          %p84 = pneg %p33
        $region18: #{tpu_custom_call.1} parent=15 // pred_check_branch
          %86 = sbr.rel (%p84) target = $region20
        $region19: #{tpu_custom_call.1} parent=15 // pred_region
          %s87 = sand.u32 %s23, 1
          %s88 = scalar_lea.sflag [#allocation3], %s87
          %s89 = sand.u32 %s23, 1
          %s90 = smul.addr %s89, 8
          %s91 = scalar_lea.vmem [#allocation2], %s90
          %s93 = ssub.s32 128, 128
          %94 = vsyncadd %s88, %s93
          %s95 = smul.addr %s13, 128
          %s96 = scalar_lea.hbm %s0, %s95
          %s98 = sshll.u32 %s91, 4
          %s99 = int_to_ptr.vmem [resolvable:$true] %s98
          %101 = dma.hbm_to_vmem [thread:$0]  %s96, 128, %s99, %s88
        $region20: #{tpu_custom_call.1} parent=15 // pred_fallthru
          _
      $region16: #{tpu_custom_call.1} parent=5 // pred_fallthru
        _
      %p102 = scmp.le.s32.totalorder 1, %s13
      %p103 = scmp.lt.s32.totalorder %s13, 3
      %p104 = pnand %p102, %p103
      %p105 = pneg %p104
      // Predicated region
      $region21: #{tpu_custom_call.1} parent=5 // pred_check
        _
      $region22: #{tpu_custom_call.1} parent=5 // pred_check_branch
        %107 = sbr.rel (%p104) target = $region24
      $region23: #{tpu_custom_call.1} parent=5 // pred_region
        %s108 = ssub.s32 %s13, 1
        %s109 = sand.u32 %s26, 1
        %s110 = scalar_lea.sflag [#allocation3], %s109
        %s111 = sand.u32 %s26, 1
        %s112 = smul.addr %s111, 8
        %s113 = scalar_lea.vmem [#allocation2], %s112
        // Predicated region
        $region25: #{tpu_custom_call.1} parent=23 // pred_check
          %p114 = pneg %p39
        $region26: #{tpu_custom_call.1} parent=23 // pred_check_branch
          %116 = sbr.rel (%p114) target = $region28
        $region27: #{tpu_custom_call.1} parent=23 // pred_region
          %117 = dma.done %s110, 128
        $region28: #{tpu_custom_call.1} parent=23 // pred_fallthru
          _
        %s118 = sand.u32 %s26, 1
        %s119 = scalar_lea.sflag [#allocation3], %s118
        %s120 = sand.u32 %s26, 1
        %s121 = smul.addr %s120, 8
        %s122 = scalar_lea.vmem [#allocation2], %s121
        %p123 = pneg %p39
        %p124 = pneg %p36
        %p125 = pneg %p65
        %p126 = pneg %p62
        %s127 = sand.u32 %s52, 1
        %s128 = scalar_lea.sflag [#allocation4], %s127
        %s129 = sand.u32 %s52, 1
        %s130 = smul.addr %s129, 8
        %s131 = scalar_lea.vmem [#allocation5], %s130
        %v132 = vld [vmem:[%s113] sm:$0xff]
        %v133 = vmul.f32 %v132, 0.62831855
        %v134 = vand.u32 2147483647, %v133
        %vm135 = vcmp.le.f32.partialorder %v134, 0.7853982
        %vm136 = vcmp.lt.s32.totalorder %v133, 0
        %v137 = vand.u32 %v133, 2139095040
        %v138 = vshrl.u32 %v137, 23
        %v139 = vsub.s32 %v138, 127
        %v140 = vand.u32 2147483647, %v133
        %v141 = vand.u32 %v140, 8388607
        %v142 = vor.u32 %v141, 8388608
        %v143 = vsub.s32 0, %v142
        %v144 = vadd.s32 %v139, 1
        %vm145 = vcmp.gt.s32.totalorder %v144, 0
        %v146 = vsel %vm145, %v144, 0
        %v147 = vshrl.u32 %v146, 5
        %v148 = vand.u32 %v146, 31
        %v149 = vsub.s32 32, %v148
        %v150 = vshrl.u32 683565275, %v149
        %v151 = vshll.u32 683565275, %v148
        %v152 = vshrl.u32 2475754826, %v149
        %v153 = vor.u32 %v151, %v152
        %v154 = vshll.u32 2475754826, %v148
        %v155 = vshrl.u32 2131351028, %v149
        %v156 = vor.u32 %v154, %v155
        %v157 = vshll.u32 2131351028, %v148
        %v158 = vshrl.u32 2102212464, %v149
        %v159 = vor.u32 %v157, %v158
        %v160 = vshll.u32 2102212464, %v148
        %v161 = vshrl.u32 920167782, %v149
        %v162 = vor.u32 %v160, %v161
        %v163 = vshll.u32 920167782, %v148
        %v164 = vshrl.u32 1326507024, %v149
        %v165 = vor.u32 %v163, %v164
        %vm166 = vcmp.lt.s32.totalorder %v147, 1
        %vm167 = vcmp.lt.s32.totalorder %v147, 2
        %vm168 = vcmp.lt.s32.totalorder %v147, 3
        %vm169 = vcmp.lt.s32.totalorder %v147, 4
        %v170 = vsel %vm166, %v150, %v153
        %v171 = vsel %vm169, %v159, 2102212464
        %v172 = vsel %vm168, %v156, %v171
        %v173 = vsel %vm167, %v170, %v172
        %v174 = vsel %vm166, %v153, %v156
        %v175 = vsel %vm169, %v162, 920167782
        %v176 = vsel %vm168, %v159, %v175
        %v177 = vsel %vm167, %v174, %v176
        %v178 = vsel %vm166, %v156, %v159
        %v179 = vsel %vm169, %v165, 1326507024
        %v180 = vsel %vm168, %v162, %v179
        %v181 = vsel %vm167, %v178, %v180
        %v182 = vshll.u32 %v142, 8
        %v183 = vmul.u32.u64.compose %v182, %v181
        %v184 = vextract.low.u32 %v183
        %v185 = vextract.high.u32 %v183
        %v186 = vmul.u32.u64.compose %v182, %v177
        %v187 = vextract.low.u32 %v186
        %v188 = vextract.high.u32 %v186
        %v189 = vmul.u32 %v182, %v173
        %v190 = vadd.s32 %v185, %v187
        %vm191 = vc.u32 %v185, %v187
        %v192 = vadd.s32 %v188, 1
        %v193 = vsel %vm191, %v192, %v188
        %v194 = vadd.s32 %v189, %v193
        %v195 = vadd.s32 %v194, 536870912
        %v196 = vshrl.u32 %v195, 30
        %v197 = vshll.u32 %v196, 30
        %v198 = vsub.s32 %v194, %v197
        %vm199 = vcmp.lt.s32.totalorder %v198, 0
        %v200 = vsub.s32 0, %v198
        %v201 = vsel %vm199, %v200, %v198
        %v202 = vclz %v201
        %v203 = vsub.s32 %v202, 2
        %vm204 = vcmp.gt.s32.totalorder 0, %v203
        %v205 = vsel %vm204, 0, %v203
        %v206 = vsub.s32 32, %v205
        %v207 = vshll.u32 %v198, %v205
        %v208 = vshrl.u32 %v190, %v206
        %v209 = vor.u32 %v207, %v208
        %v210 = vsub.s32 4294967266, %v205
        %v211 = vadd.s32 %v210, 127
        %v212 = vshll.u32 %v211, 23
        %v213 = vor.u32 4788187, %v212
        %v214 = vand.u32 2147483647, %v213
        %v216 = vcvt.s32.f32 %v209
        %v217 = vmul.f32 %v216, %v214
        %v218 = vxor.u32 %v217, 2147483648
        %v219 = vsel %vm136, %v218, %v217
        %v220 = vsub.s32 4, %v196
        %v221 = vsel %vm136, %v220, %v196
        %v222 = vsel %vm135, %v133, %v219
        %v223 = vsel %vm135, 0, %v221
        %v224 = vcosq.f32.pop %v222
        %v225 = vsinq.f32.pop %v222
        %vm226 = vweird.f32 %v133
        %v227 = vand.u32 %v223, 3
        %vm228 = vcmp.lt.s32.totalorder %v227, 2
        %vm229 = vcmp.eq.s32.totalorder %v227, 0
        %v230 = vxor.u32 %v225, 2147483648
        %v231 = vsel %vm229, %v224, %v230
        %vm232 = vcmp.eq.s32.totalorder %v227, 2
        %v233 = vxor.u32 %v224, 2147483648
        %v234 = vsel %vm232, %v233, %v225
        %v235 = vsel %vm228, %v231, %v234
        %v236 = vsel %vm226, nan, %v235
        %v237 = vmul.f32 %v236, 0.5
        %v238 = vadd.f32 %v237, 0.5
        %vm239 = vcmp.lt.f32.partialorder %v132, 5.0
        %v240 = vsel %vm239, 1, 0
        %v241 = vcvt.s32.f32 %v240
        %v242 = vmul.f32 %v238, %v241
        %v243 = vadd.f32 %v242, 0.1
        %244 = vst [vmem:[%s131] sm:$0xff] %v243
        %s245 = sand.u32 %s52, 1
        %s246 = scalar_lea.sflag [#allocation4], %s245
        %s247 = sand.u32 %s52, 1
        %s248 = smul.addr %s247, 8
        %s249 = scalar_lea.vmem [#allocation5], %s248
        // Predicated region
        $region29: #{tpu_custom_call.1} parent=23 // pred_check
          %p250 = pneg %p62
        $region30: #{tpu_custom_call.1} parent=23 // pred_check_branch
          %252 = sbr.rel (%p250) target = $region32
        $region31: #{tpu_custom_call.1} parent=23 // pred_region
          %s254 = ssub.s32 128, 128
          %255 = vsyncadd %s246, %s254
          %s256 = smul.addr %s18, 128
          %s257 = scalar_lea.hbm %s1, %s256
          %s259 = sshll.u32 %s249, 4
          %s260 = int_to_ptr.vmem [resolvable:$true] %s259
          %262 = dma.vmem_to_hbm [thread:$0]  %s260, 128, %s257, %s246
        $region32: #{tpu_custom_call.1} parent=23 // pred_fallthru
          _
      $region24: #{tpu_custom_call.1} parent=5 // pred_fallthru
        _
      %p263 = scmp.le.s32.totalorder 2, %s13
      // Predicated region
      $region33: #{tpu_custom_call.1} parent=5 // pred_check
        %p264 = pneg %p263
      $region34: #{tpu_custom_call.1} parent=5 // pred_check_branch
        %266 = sbr.rel (%p264) target = $region36
      $region35: #{tpu_custom_call.1} parent=5 // pred_region
        %s267 = ssub.s32 %s13, 2
        // Predicated region
        $region37: #{tpu_custom_call.1} parent=35 // pred_check
          %p268 = pneg %p68
        $region38: #{tpu_custom_call.1} parent=35 // pred_check_branch
          %270 = sbr.rel (%p268) target = $region40
        $region39: #{tpu_custom_call.1} parent=35 // pred_region
          %s271 = sand.u32 %s53, 1
          %s272 = scalar_lea.sflag [#allocation4], %s271
          %s273 = sand.u32 %s53, 1
          %s274 = smul.addr %s273, 8
          %s275 = scalar_lea.vmem [#allocation5], %s274
          %276 = dma.done %s272, 128
        $region40: #{tpu_custom_call.1} parent=35 // pred_fallthru
          _
      $region36: #{tpu_custom_call.1} parent=5 // pred_fallthru
        _
    $region6: #{tpu_custom_call.1} parent=1 // loop_footer
      %s17 = sadd.s32 1, %s13
    $region7: #{tpu_custom_call.1} parent=1 // loop_footer_branch
      %12 = sbr.rel target = $region3
    $region8: #{tpu_custom_call.1} parent=1 // loop_exit
      _
    %277 = vsyncpa [#allocation3], 1
    %s278 = scalar_lea.sflag [#allocation3], 1
    %279 = vsyncpa %s278, 1
    %280 = vsyncpa [#allocation4], 1
    %s281 = scalar_lea.sflag [#allocation4], 1
    %282 = vsyncpa %s281, 1

</llo_original>
